<compile_context>
chip_gen: v7x
topology: tpu7x:2x2x1
jax: 0.10.0
libtpu: 0.0.40
codegen_flags: <defaults>
</compile_context>

<pallas_src>
import math

import jax
import jax.numpy as jnp
from jax.experimental import pallas as pl
from jax.experimental.pallas import tpu as pltpu


def _round_up(n, m):
    return ((n + m - 1) // m) * m


def _make_mlp_kernel(num_hidden, activation):
    """Build a kernel for `num_hidden` hidden layers + the action_mean layer."""
    if activation == "tanh":
        act = jnp.tanh
    elif activation == "relu":
        act = lambda v: jnp.maximum(v, 0.0)
    elif activation == "sigmoid":
        act = jax.nn.sigmoid
    else:
        raise ValueError(f"unsupported activation: {activation}")

    def kernel(*refs):
        # refs = (x, w0, b0, ..., w_{L-1}, b_{L-1}, w_mean, b_mean, mean_out)
        x_ref = refs[0]
        mean_ref = refs[-1]
        wb = refs[1:-1]

        h = x_ref[...]                                      # f32 (tb, state_dim)
        for l in range(num_hidden):
            w = wb[2 * l][...]                              # bf16 (in, out)
            b = wb[2 * l + 1][...]                          # f32  (1, out)
            z = jnp.dot(h.astype(jnp.bfloat16), w,
                        preferred_element_type=jnp.float32) + b
            h = act(z)                                      # f32 VPU/EUP work

        wm = wb[2 * num_hidden][...]                        # bf16 (in, a_out)
        bm = wb[2 * num_hidden + 1][...]                    # f32  (1, a_out)
        mean = jnp.dot(h.astype(jnp.bfloat16), wm,
                       preferred_element_type=jnp.float32) + bm
        mean_ref[...] = mean.astype(mean_ref.dtype)

    return kernel


def policy_forward_pallas(x, params, *, activation="tanh", block_b=512,
                          lane_pad_batch_threshold=4096, expand_cov=True):
    """Returns (action_mean, None, action_cov) mirroring Policy.forward."""
    hidden_layers, (wm, bm), raw_cov = params
    batch, state_dim = x.shape
    action_dim = wm.shape[0]
    num_hidden = len(hidden_layers)

    # ---- one-time layout / dtype work outside the kernel ------------------
    # Pre-transpose weights to (in, out) and cast to bf16 (MXU operands);
    # biases stay f32 so bias-add + activation run in f32 on the VPU/EUP.
    wts, bs = [], []
    for (w, b) in hidden_layers:
        wts.append(w.T.astype(jnp.bfloat16))
        bs.append(b.reshape(1, -1).astype(jnp.float32))

    # Output lane handling (batch-size dependent): for small/medium batches,
    # pad action_dim up to 128 lanes so the mean store is a full-lane vst;
    # for large batches the 16x HBM writeback inflation dominates, so keep
    # the true narrow output (masked vst, 1/16th the bytes).
    pad_lanes = (action_dim % 128 != 0) and (batch <= lane_pad_batch_threshold)
    a_out = _round_up(action_dim, 128) if pad_lanes else action_dim
    wmt = wm.T.astype(jnp.bfloat16)
    bm_p = bm.astype(jnp.float32)
    if a_out != action_dim:
        wmt = jnp.pad(wmt, ((0, 0), (0, a_out - action_dim)))
        bm_p = jnp.pad(bm_p, (0, a_out - action_dim))
    wts.append(wmt)
    bs.append(bm_p.reshape(1, -1))

    # Batch tiling:
    #  * large batch: block_b-row tiles (amortize ~0.35us per grid step, fill
    #    the MXU M side on v6e/v7x's 256-wide MXU).
    #  * small batch: split into at least two grid steps so the "parallel"
    #    batch axis can shard across both TensorCores on v7x.
    if batch <= 8:
        tb = 8
    elif batch <= 2 * block_b:
        tb = _round_up(-(-batch // 2), 8)     # ceil(batch/2), sublane-aligned
    else:
        tb = block_b
    padded_batch = _round_up(batch, tb)
    x_in = x if padded_batch == batch else jnp.pad(
        x, ((0, padded_batch - batch), (0, 0)))

    def resident(arr):
        nd = arr.ndim
        # Constant block index on every grid step -> tile stays VMEM-resident.
        return pl.BlockSpec(arr.shape, lambda i, _n=nd: (0,) * _n)

    flat_wb, wb_specs = [], []
    for w, b in zip(wts, bs):
        flat_wb += [w, b]
        wb_specs += [resident(w), resident(b)]

    # VMEM budget: account for Pallas' default 2x double-buffering on every
    # input (including the constant-index resident weights) plus the
    # compiler-staged intermediate activations, then set the scoped limit
    # explicitly (matters once block_b / hidden sizes grow, esp. on v7x).
    est = 2 * tb * state_dim * 4 + 2 * tb * a_out * 4
    for w, b in zip(wts, bs):
        est += 2 * w.size * w.dtype.itemsize + 2 * b.size * b.dtype.itemsize
    widths = [state_dim] + [int(w.shape[1]) for w in wts]
    est += 3 * tb * max(widths) * 4
    vmem_limit = int(min(max(2 * est, 32 << 20), 56 << 20))

    kernel = _make_mlp_kernel(num_hidden, activation)

    mean_full = pl.pallas_call(
        kernel,
        out_shape=jax.ShapeDtypeStruct((padded_batch, a_out), jnp.float32),
        grid=(padded_batch // tb,),
        in_specs=[pl.BlockSpec((tb, state_dim), lambda i: (i, 0))] + wb_specs,
        out_specs=pl.BlockSpec((tb, a_out), lambda i: (i, 0)),
        compiler_params=pltpu.CompilerParams(
            dimension_semantics=("parallel",),
            vmem_limit_bytes=vmem_limit),
    )(x_in, *flat_wb)

    mean = mean_full[:batch, :action_dim]

    # Covariance depends only on parameters: plain JAX outside the kernel.
    cov = raw_cov.T @ raw_cov + 1e-5 * jnp.eye(action_dim, dtype=jnp.float32)
    if expand_cov:
        # torch returns an .expand()ed view; in JAX this materializes if it
        # escapes jit — pass expand_cov=False to get the (A, A) matrix only.
        action_cov = jnp.broadcast_to(cov, (batch, action_dim, action_dim))
    else:
        action_cov = cov
    return mean, None, action_cov


def init_policy_params(key, state_dim, action_dim, hidden_size=(128, 128),
                       scale_cov=1.0):
    """nn.Linear default init (uniform +/- 1/sqrt(fan_in)); then
    action_mean.weight *= 0.1, action_mean.bias *= 0.0,
    raw_cov = randn(A, A) * scale_cov."""
    n_linear = len(hidden_size) + 1
    keys = jax.random.split(key, 2 * n_linear + 1)

    def linear_init(kw, kb, fan_in, fan_out):
        bound = 1.0 / math.sqrt(fan_in)
        w = jax.random.uniform(kw, (fan_out, fan_in), jnp.float32, -bound, bound)
        b = jax.random.uniform(kb, (fan_out,), jnp.float32, -bound, bound)
        return w, b

    hidden_layers = []
    last = state_dim
    ki = 0
    for nh in hidden_size:
        w, b = linear_init(keys[ki], keys[ki + 1], last, nh)
        hidden_layers.append((w, b))
        last = nh
        ki += 2
    wm, bm = linear_init(keys[ki], keys[ki + 1], last, action_dim)
    wm = wm * 0.1
    bm = bm * 0.0
    raw_cov = jax.random.normal(keys[-1], (action_dim, action_dim),
                                jnp.float32) * scale_cov
    return (tuple(hidden_layers), (wm, bm), raw_cov)


def policy_forward_ref(x, params, *, activation="tanh"):
    """Pure-JAX f32 reference for correctness checking."""
    hidden_layers, (wm, bm), raw_cov = params
    act = {"tanh": jnp.tanh,
           "relu": lambda v: jnp.maximum(v, 0.0),
           "sigmoid": jax.nn.sigmoid}[activation]
    h = x
    for w, b in hidden_layers:
        h = act(h @ w.T + b)
    mean = h @ wm.T + bm
    a = mean.shape[1]
    cov = raw_cov.T @ raw_cov + 1e-5 * jnp.eye(a, dtype=jnp.float32)
    cov = jnp.broadcast_to(cov, (mean.shape[0], a, a))
    return mean, None, cov


if __name__ == "__main__":
    # MLP policy over flat states; hidden size = module default (128, 128).
    batch, state_dim, action_dim = 64, 16, 8
    hidden = (128, 128)

    key = jax.random.PRNGKey(0)
    kx, kp = jax.random.split(key)
    x = jax.random.normal(kx, (batch, state_dim), jnp.float32)
    params = init_policy_params(kp, state_dim, action_dim, hidden_size=hidden,
                                scale_cov=1.0)

    mean, _, cov = policy_forward_pallas(x, params)
    jax.block_until_ready((mean, cov))

    mean_ref, _, cov_ref = policy_forward_ref(x, params)
    assert mean.shape == (batch, action_dim)
    assert cov.shape == (batch, action_dim, action_dim)
    # bf16 MXU operands -> looser tolerance vs. the pure-f32 reference.
    assert jnp.allclose(mean, mean_ref, atol=1e-2, rtol=1e-2)
    assert jnp.allclose(cov, cov_ref, atol=1e-5, rtol=1e-5)

    print("KERNEL_OK")
</pallas_src>

<mosaic_0001>
module attributes {stable_mosaic.version = 11 : i64} {
  func.func @kernel(%arg0: i32, %arg1: memref<32x16xf32, #tpu.memory_space<vmem>>, %arg2: memref<16x128xbf16, #tpu.memory_space<vmem>>, %arg3: memref<1x128xf32, #tpu.memory_space<vmem>>, %arg4: memref<128x128xbf16, #tpu.memory_space<vmem>>, %arg5: memref<1x128xf32, #tpu.memory_space<vmem>>, %arg6: memref<128x128xbf16, #tpu.memory_space<vmem>>, %arg7: memref<1x128xf32, #tpu.memory_space<vmem>>, %arg8: memref<32x128xf32, #tpu.memory_space<vmem>>) attributes {dimension_semantics = [#tpu.dimension_semantics<parallel>], iteration_bounds = array<i64: 2>, scalar_prefetch = 0 : i64, scratch_operands = 0 : i64, tpu.core_type = #tpu.core_type<tc>, window_params = [{transform_indices = @transform_0, window_bounds = array<i64: 32, 16>}, {pipeline_mode = #tpu.pipeline_mode<synchronous>, transform_indices = @transform_1, window_bounds = array<i64: 16, 128>}, {pipeline_mode = #tpu.pipeline_mode<synchronous>, transform_indices = @transform_2, window_bounds = array<i64: 1, 128>}, {pipeline_mode = #tpu.pipeline_mode<synchronous>, transform_indices = @transform_3, window_bounds = array<i64: 128, 128>}, {pipeline_mode = #tpu.pipeline_mode<synchronous>, transform_indices = @transform_4, window_bounds = array<i64: 1, 128>}, {pipeline_mode = #tpu.pipeline_mode<synchronous>, transform_indices = @transform_5, window_bounds = array<i64: 128, 128>}, {pipeline_mode = #tpu.pipeline_mode<synchronous>, transform_indices = @transform_6, window_bounds = array<i64: 1, 128>}, {transform_indices = @transform_7, window_bounds = array<i64: 32, 128>}]} {
    %c0 = arith.constant 0 : index
    %c0_0 = arith.constant 0 : index
    %0 = vector.load %arg1[%c0, %c0_0] : memref<32x16xf32, #tpu.memory_space<vmem>>, vector<32x16xf32>
    %c0_1 = arith.constant 0 : index
    %c0_2 = arith.constant 0 : index
    %1 = vector.load %arg2[%c0_1, %c0_2] : memref<16x128xbf16, #tpu.memory_space<vmem>>, vector<16x128xbf16>
    %c0_3 = arith.constant 0 : index
    %c0_4 = arith.constant 0 : index
    %2 = vector.load %arg3[%c0_3, %c0_4] : memref<1x128xf32, #tpu.memory_space<vmem>>, vector<1x128xf32>
    %3 = arith.truncf %0 : vector<32x16xf32> to vector<32x16xbf16>
    %cst = arith.constant dense<0.000000e+00> : vector<32x128xf32>
    %4 = tpu.matmul %3, %1, %cst {dimension_numbers = #tpu.dot_dimension_numbers<[1], [0], [0], [1], [0, 0, 1, 1], [], []>} : vector<32x16xbf16>, vector<16x128xbf16>, vector<32x128xf32> -> vector<32x128xf32>
    %5 = vector.broadcast %2 : vector<1x128xf32> to vector<32x128xf32>
    %6 = arith.addf %4, %5 : vector<32x128xf32>
    %7 = math.tanh %6 : vector<32x128xf32>
    %c0_5 = arith.constant 0 : index
    %c0_6 = arith.constant 0 : index
    %8 = vector.load %arg4[%c0_5, %c0_6] : memref<128x128xbf16, #tpu.memory_space<vmem>>, vector<128x128xbf16>
    %c0_7 = arith.constant 0 : index
    %c0_8 = arith.constant 0 : index
    %9 = vector.load %arg5[%c0_7, %c0_8] : memref<1x128xf32, #tpu.memory_space<vmem>>, vector<1x128xf32>
    %10 = arith.truncf %7 : vector<32x128xf32> to vector<32x128xbf16>
    %cst_9 = arith.constant dense<0.000000e+00> : vector<32x128xf32>
    %11 = tpu.matmul %10, %8, %cst_9 {dimension_numbers = #tpu.dot_dimension_numbers<[1], [0], [0], [1], [0, 0, 1, 1], [], []>} : vector<32x128xbf16>, vector<128x128xbf16>, vector<32x128xf32> -> vector<32x128xf32>
    %12 = vector.broadcast %9 : vector<1x128xf32> to vector<32x128xf32>
    %13 = arith.addf %11, %12 : vector<32x128xf32>
    %14 = math.tanh %13 : vector<32x128xf32>
    %c0_10 = arith.constant 0 : index
    %c0_11 = arith.constant 0 : index
    %15 = vector.load %arg6[%c0_10, %c0_11] : memref<128x128xbf16, #tpu.memory_space<vmem>>, vector<128x128xbf16>
    %c0_12 = arith.constant 0 : index
    %c0_13 = arith.constant 0 : index
    %16 = vector.load %arg7[%c0_12, %c0_13] : memref<1x128xf32, #tpu.memory_space<vmem>>, vector<1x128xf32>
    %17 = arith.truncf %14 : vector<32x128xf32> to vector<32x128xbf16>
    %cst_14 = arith.constant dense<0.000000e+00> : vector<32x128xf32>
    %18 = tpu.matmul %17, %15, %cst_14 {dimension_numbers = #tpu.dot_dimension_numbers<[1], [0], [0], [1], [0, 0, 1, 1], [], []>} : vector<32x128xbf16>, vector<128x128xbf16>, vector<32x128xf32> -> vector<32x128xf32>
    %19 = vector.broadcast %16 : vector<1x128xf32> to vector<32x128xf32>
    %20 = arith.addf %18, %19 : vector<32x128xf32>
    %c0_15 = arith.constant 0 : index
    %c0_16 = arith.constant 0 : index
    %21 = vector.load %arg8[%c0_15, %c0_16] : memref<32x128xf32, #tpu.memory_space<vmem>>, vector<32x128xf32>
    tpu.vector_store %arg8[%c0_15, %c0_16], %20 {strides = array<i32>} : memref<32x128xf32, #tpu.memory_space<vmem>>, vector<32x128xf32>,
    return
  }
  func.func @transform_0(%arg0: i32) -> (i32, i32) {
    %c0_i32 = arith.constant 0 : i32
    %c0_i32_0 = arith.constant 0 : i32
    return %arg0, %c0_i32 : i32, i32
  }
  func.func @transform_1(%arg0: i32) -> (i32, i32) {
    %c0_i32 = arith.constant 0 : i32
    %c0_i32_0 = arith.constant 0 : i32
    %c0_i32_1 = arith.constant 0 : i32
    return %c0_i32, %c0_i32_0 : i32, i32
  }
  func.func @transform_2(%arg0: i32) -> (i32, i32) {
    %c0_i32 = arith.constant 0 : i32
    %c0_i32_0 = arith.constant 0 : i32
    %c0_i32_1 = arith.constant 0 : i32
    return %c0_i32, %c0_i32_0 : i32, i32
  }
  func.func @transform_3(%arg0: i32) -> (i32, i32) {
    %c0_i32 = arith.constant 0 : i32
    %c0_i32_0 = arith.constant 0 : i32
    %c0_i32_1 = arith.constant 0 : i32
    return %c0_i32, %c0_i32_0 : i32, i32
  }
  func.func @transform_4(%arg0: i32) -> (i32, i32) {
    %c0_i32 = arith.constant 0 : i32
    %c0_i32_0 = arith.constant 0 : i32
    %c0_i32_1 = arith.constant 0 : i32
    return %c0_i32, %c0_i32_0 : i32, i32
  }
  func.func @transform_5(%arg0: i32) -> (i32, i32) {
    %c0_i32 = arith.constant 0 : i32
    %c0_i32_0 = arith.constant 0 : i32
    %c0_i32_1 = arith.constant 0 : i32
    return %c0_i32, %c0_i32_0 : i32, i32
  }
  func.func @transform_6(%arg0: i32) -> (i32, i32) {
    %c0_i32 = arith.constant 0 : i32
    %c0_i32_0 = arith.constant 0 : i32
    %c0_i32_1 = arith.constant 0 : i32
    return %c0_i32, %c0_i32_0 : i32, i32
  }
  func.func @transform_7(%arg0: i32) -> (i32, i32) {
    %c0_i32 = arith.constant 0 : i32
    %c0_i32_0 = arith.constant 0 : i32
    return %arg0, %c0_i32 : i32, i32
  }
}

</mosaic_0001>

<llo_original>
// kernel: tpu_custom_call.1
$region0: #{tpu_custom_call.1}
  #allocation0 [shape = 'u32[]', space=smem, size = 0x4, offset = 0x4, fixed_abs, tag = 'smem constant byte address 0x4 - core index']
  #allocation1 [shape = 'u32[144,128]{1,0:T(1,128)}', space=vmem, size = 0x12000, scoped, tag = 'internal scratch']
  %s0 = inlined_call_operand.vmem [shape: f32[64,16], index: 0, kind: input, shape index: {}]
  %s1 = inlined_call_operand.vmem [shape: bf16[16,128], index: 1, kind: input, shape index: {}]
  %s2 = inlined_call_operand.vmem [shape: f32[1,128], index: 2, kind: input, shape index: {}]
  %s3 = inlined_call_operand.vmem [shape: bf16[128,128], index: 3, kind: input, shape index: {}]
  %s4 = inlined_call_operand.vmem [shape: f32[1,128], index: 4, kind: input, shape index: {}]
  %s5 = inlined_call_operand.hbm [shape: bf16[128,128], index: 5, kind: input, shape index: {}]
  %s6 = inlined_call_operand.vmem [shape: f32[1,128], index: 6, kind: input, shape index: {}]
  %s7 = inlined_call_operand.hbm [shape: f32[64,128], index: 7, kind: output, shape index: {}]
  %s8 = sld [smem:[#allocation0]]
  $region65: #{tpu_custom_call.1} parent=0
    _
  %s10 = ssub.s32 1, %s8
  %s11 = scalar_select 0, %s10, %s8
  $region1: #{tpu_custom_call.1} parent=0
    #allocation2 [shape = 'u8[32768]{0}', space=vmem, size = 0x8000, scoped, tag = 'input window, operand 5, single buffered']
    #allocation3 [shape = 's32[2]{0}', space=sflag, size = 0x8, scoped, tag = 'scoped memory for tpu_custom_call.1']
    #allocation4 [shape = 's32[2]{0}', space=sflag, size = 0x8, scoped, tag = 'scoped memory for tpu_custom_call.1']
    #allocation5 [shape = 'u8[32768]{0}', space=vmem, size = 0x8000, scoped, tag = 'output window, operand 0']
    %12 = vsyncpa [#allocation3], 0
    %13 = vsyncpa [#allocation4], 0
    %s14 = scalar_lea.sflag [#allocation4], 1
    %15 = vsyncpa %s14, 0
    loop: start=0, step=1, limit=4
    $region2: #{tpu_custom_call.1} parent=1 // loop_pre_header
      _
    $region3: #{tpu_custom_call.1} parent=1 // loop_header
      %s17 = sphi 0, %s21
      %p18 = scmp.ge.s32.totalorder %s17, 4
      %s27 = sphi 0, %s29
      %s30 = sphi 0, %s27
      %s31 = sphi 0, %s30
      %s47 = sphi 0, %s31
      %s51 = sphi 0, %s51
      %s53 = sphi 0, %s51
      %s54 = sphi 0, %s53
      %s68 = sphi 0, %s54
      %s72 = sphi 0, %s72
      %s74 = sphi 0, %s72
      %s75 = sphi 0, %s74
      %s89 = sphi 0, %s75
      %s93 = sphi 0, %s93
      %s95 = sphi 0, %s93
      %s96 = sphi 0, %s95
      %s110 = sphi 0, %s96
      %s114 = sphi 0, %s114
      %s116 = sphi 0, %s114
      %s117 = sphi 0, %s116
      %s131 = sphi 0, %s117
      %s135 = sphi 0, %s135
      %s137 = sphi 0, %s135
      %s138 = sphi 0, %s137
      %s152 = sphi 0, %s138
      %s156 = sphi 0, %s156
      %s158 = sphi 0, %s156
      %s159 = sphi 0, %s158
      %s173 = sphi 0, %s159
      %s179 = sphi 0, %s181
      %s182 = sphi 0, %s179
      %s183 = sphi 0, %s182
      %s199 = sphi 0, %s183
    $region4: #{tpu_custom_call.1} parent=1 // loop_header_branch
      %20 = sbr.rel (%p18) target = $region8
    $region5: #{tpu_custom_call.1} parent=1 // loop_body
      %s22 = ssub.s32 %s17, 1
      %s23 = ssub.s32 %s17, 2
      %s24 = sadd.s32 %s17, 1
      %s25 = ssub.s32 %s17, %s24
      %p26 = scmp.eq.s32.totalorder %s25, 0
      %s28 = sadd.s32 %s27, 1
      %s29 = scalar_select %p26, %s27, %s28
      %p32 = pneg %p26
      %p33 = scmp.eq.s32.totalorder %s17, 1
      %p34 = por %p32, %p33
      %p35 = scmp.ne.s32.totalorder %s27, %s30
      %p36 = scmp.eq.s32.totalorder %s17, 0
      %p37 = por %p35, %p36
      %p38 = scmp.ne.s32.totalorder %s27, %s30
      %p39 = scmp.eq.s32.totalorder %s22, 1
      %p40 = por %p38, %p39
      %p41 = scmp.ne.s32.totalorder %s30, %s31
      %p42 = scmp.eq.s32.totalorder %s22, 0
      %p43 = por %p41, %p42
      %p44 = scmp.ne.s32.totalorder %s30, %s31
      %p45 = scmp.eq.s32.totalorder %s23, 1
      %p46 = por %p44, %p45
      %p48 = scmp.ne.s32.totalorder %s31, %s47
      %p49 = scmp.eq.s32.totalorder %s23, 0
      %p50 = por %p48, %p49
      %s52 = sadd.s32 %s51, 1
      %p55 = scmp.eq.s32.totalorder %s17, 1
      %p56 = scmp.ne.s32.totalorder %s51, %s53
      %p57 = scmp.eq.s32.totalorder %s17, 0
      %p58 = por %p56, %p57
      %p59 = scmp.ne.s32.totalorder %s51, %s53
      %p60 = scmp.eq.s32.totalorder %s22, 1
      %p61 = por %p59, %p60
      %p62 = scmp.ne.s32.totalorder %s53, %s54
      %p63 = scmp.eq.s32.totalorder %s22, 0
      %p64 = por %p62, %p63
      %p65 = scmp.ne.s32.totalorder %s53, %s54
      %p66 = scmp.eq.s32.totalorder %s23, 1
      %p67 = por %p65, %p66
      %p69 = scmp.ne.s32.totalorder %s54, %s68
      %p70 = scmp.eq.s32.totalorder %s23, 0
      %p71 = por %p69, %p70
      %s73 = sadd.s32 %s72, 1
      %p76 = scmp.eq.s32.totalorder %s17, 1
      %p77 = scmp.ne.s32.totalorder %s72, %s74
      %p78 = scmp.eq.s32.totalorder %s17, 0
      %p79 = por %p77, %p78
      %p80 = scmp.ne.s32.totalorder %s72, %s74
      %p81 = scmp.eq.s32.totalorder %s22, 1
      %p82 = por %p80, %p81
      %p83 = scmp.ne.s32.totalorder %s74, %s75
      %p84 = scmp.eq.s32.totalorder %s22, 0
      %p85 = por %p83, %p84
      %p86 = scmp.ne.s32.totalorder %s74, %s75
      %p87 = scmp.eq.s32.totalorder %s23, 1
      %p88 = por %p86, %p87
      %p90 = scmp.ne.s32.totalorder %s75, %s89
      %p91 = scmp.eq.s32.totalorder %s23, 0
      %p92 = por %p90, %p91
      %s94 = sadd.s32 %s93, 1
      %p97 = scmp.eq.s32.totalorder %s17, 1
      %p98 = scmp.ne.s32.totalorder %s93, %s95
      %p99 = scmp.eq.s32.totalorder %s17, 0
      %p100 = por %p98, %p99
      %p101 = scmp.ne.s32.totalorder %s93, %s95
      %p102 = scmp.eq.s32.totalorder %s22, 1
      %p103 = por %p101, %p102
      %p104 = scmp.ne.s32.totalorder %s95, %s96
      %p105 = scmp.eq.s32.totalorder %s22, 0
      %p106 = por %p104, %p105
      %p107 = scmp.ne.s32.totalorder %s95, %s96
      %p108 = scmp.eq.s32.totalorder %s23, 1
      %p109 = por %p107, %p108
      %p111 = scmp.ne.s32.totalorder %s96, %s110
      %p112 = scmp.eq.s32.totalorder %s23, 0
      %p113 = por %p111, %p112
      %s115 = sadd.s32 %s114, 1
      %p118 = scmp.eq.s32.totalorder %s17, 1
      %p119 = scmp.ne.s32.totalorder %s114, %s116
      %p120 = scmp.eq.s32.totalorder %s17, 0
      %p121 = por %p119, %p120
      %p122 = scmp.ne.s32.totalorder %s114, %s116
      %p123 = scmp.eq.s32.totalorder %s22, 1
      %p124 = por %p122, %p123
      %p125 = scmp.ne.s32.totalorder %s116, %s117
      %p126 = scmp.eq.s32.totalorder %s22, 0
      %p127 = por %p125, %p126
      %p128 = scmp.ne.s32.totalorder %s116, %s117
      %p129 = scmp.eq.s32.totalorder %s23, 1
      %p130 = por %p128, %p129
      %p132 = scmp.ne.s32.totalorder %s117, %s131
      %p133 = scmp.eq.s32.totalorder %s23, 0
      %p134 = por %p132, %p133
      %s136 = sadd.s32 %s135, 1
      %p139 = scmp.eq.s32.totalorder %s17, 1
      %p140 = scmp.ne.s32.totalorder %s135, %s137
      %p141 = scmp.eq.s32.totalorder %s17, 0
      %p142 = por %p140, %p141
      %p143 = scmp.ne.s32.totalorder %s135, %s137
      %p144 = scmp.eq.s32.totalorder %s22, 1
      %p145 = por %p143, %p144
      %p146 = scmp.ne.s32.totalorder %s137, %s138
      %p147 = scmp.eq.s32.totalorder %s22, 0
      %p148 = por %p146, %p147
      %p149 = scmp.ne.s32.totalorder %s137, %s138
      %p150 = scmp.eq.s32.totalorder %s23, 1
      %p151 = por %p149, %p150
      %p153 = scmp.ne.s32.totalorder %s138, %s152
      %p154 = scmp.eq.s32.totalorder %s23, 0
      %p155 = por %p153, %p154
      %s157 = sadd.s32 %s156, 1
      %p160 = scmp.eq.s32.totalorder %s17, 1
      %p161 = scmp.ne.s32.totalorder %s156, %s158
      %p162 = scmp.eq.s32.totalorder %s17, 0
      %p163 = por %p161, %p162
      %p164 = scmp.ne.s32.totalorder %s156, %s158
      %p165 = scmp.eq.s32.totalorder %s22, 1
      %p166 = por %p164, %p165
      %p167 = scmp.ne.s32.totalorder %s158, %s159
      %p168 = scmp.eq.s32.totalorder %s22, 0
      %p169 = por %p167, %p168
      %p170 = scmp.ne.s32.totalorder %s158, %s159
      %p171 = scmp.eq.s32.totalorder %s23, 1
      %p172 = por %p170, %p171
      %p174 = scmp.ne.s32.totalorder %s159, %s173
      %p175 = scmp.eq.s32.totalorder %s23, 0
      %p176 = por %p174, %p175
      %s177 = ssub.s32 %s17, %s24
      %p178 = scmp.eq.s32.totalorder %s177, 0
      %s180 = sadd.s32 %s179, 1
      %s181 = scalar_select %p178, %s179, %s180
      %p184 = pneg %p178
      %p185 = scmp.eq.s32.totalorder %s17, 1
      %p186 = por %p184, %p185
      %p187 = scmp.ne.s32.totalorder %s179, %s182
      %p188 = scmp.eq.s32.totalorder %s17, 0
      %p189 = por %p187, %p188
      %p190 = scmp.ne.s32.totalorder %s179, %s182
      %p191 = scmp.eq.s32.totalorder %s22, 1
      %p192 = por %p190, %p191
      %p193 = scmp.ne.s32.totalorder %s182, %s183
      %p194 = scmp.eq.s32.totalorder %s22, 0
      %p195 = por %p193, %p194
      %p196 = scmp.ne.s32.totalorder %s182, %s183
      %p197 = scmp.eq.s32.totalorder %s23, 1
      %p198 = por %p196, %p197
      %p200 = scmp.ne.s32.totalorder %s183, %s199
      %p201 = scmp.eq.s32.totalorder %s23, 0
      %p202 = por %p200, %p201
      %p203 = scmp.le.s32.totalorder 1, %s17
      %p204 = scmp.lt.s32.totalorder %s17, 3
      %p205 = pnand %p203, %p204
      %p206 = pneg %p205
      // Predicated region
      $region9: #{tpu_custom_call.1} parent=5 // pred_check
        _
      $region10: #{tpu_custom_call.1} parent=5 // pred_check_branch
        %208 = sbr.rel (%p205) target = $region12
      $region11: #{tpu_custom_call.1} parent=5 // pred_region
        %s209 = ssub.s32 %s17, 1
        // Predicated region
        $region13: #{tpu_custom_call.1} parent=11 // pred_check
          %p210 = pneg %p64
        $region14: #{tpu_custom_call.1} parent=11 // pred_check_branch
          %212 = sbr.rel (%p210) target = $region16
        $region15: #{tpu_custom_call.1} parent=11 // pred_region
          _
        $region16: #{tpu_custom_call.1} parent=11 // pred_fallthru
          _
        // Predicated region
        $region17: #{tpu_custom_call.1} parent=11 // pred_check
          %p213 = pneg %p85
        $region18: #{tpu_custom_call.1} parent=11 // pred_check_branch
          %215 = sbr.rel (%p213) target = $region20
        $region19: #{tpu_custom_call.1} parent=11 // pred_region
          _
        $region20: #{tpu_custom_call.1} parent=11 // pred_fallthru
          _
        // Predicated region
        $region21: #{tpu_custom_call.1} parent=11 // pred_check
          %p216 = pneg %p106
        $region22: #{tpu_custom_call.1} parent=11 // pred_check_branch
          %218 = sbr.rel (%p216) target = $region24
        $region23: #{tpu_custom_call.1} parent=11 // pred_region
          _
        $region24: #{tpu_custom_call.1} parent=11 // pred_fallthru
          _
        // Predicated region
        $region25: #{tpu_custom_call.1} parent=11 // pred_check
          %p219 = pneg %p127
        $region26: #{tpu_custom_call.1} parent=11 // pred_check_branch
          %221 = sbr.rel (%p219) target = $region28
        $region27: #{tpu_custom_call.1} parent=11 // pred_region
          _
        $region28: #{tpu_custom_call.1} parent=11 // pred_fallthru
          _
        // Predicated region
        $region29: #{tpu_custom_call.1} parent=11 // pred_check
          %p222 = pneg %p148
        $region30: #{tpu_custom_call.1} parent=11 // pred_check_branch
          %224 = sbr.rel (%p222) target = $region32
        $region31: #{tpu_custom_call.1} parent=11 // pred_region
          %s226 = ssub.s32 1024, 1024
          %227 = vsyncadd [#allocation3], %s226
          %s228 = sshll.u32 [#allocation2], 4
          %s229 = int_to_ptr.vmem [resolvable:$true] %s228
          %234 = dma.hbm_to_vmem [thread:$0]  %s5, 1024, %s229, [#allocation3], 64, 64, 4
        $region32: #{tpu_custom_call.1} parent=11 // pred_fallthru
          _
        // Predicated region
        $region33: #{tpu_custom_call.1} parent=11 // pred_check
          %p235 = pneg %p169
        $region34: #{tpu_custom_call.1} parent=11 // pred_check_branch
          %237 = sbr.rel (%p235) target = $region36
        $region35: #{tpu_custom_call.1} parent=11 // pred_region
          _
        $region36: #{tpu_custom_call.1} parent=11 // pred_fallthru
          _
      $region12: #{tpu_custom_call.1} parent=5 // pred_fallthru
        _
      %p238 = scmp.lt.s32.totalorder %s17, 2
      // Predicated region
      $region37: #{tpu_custom_call.1} parent=5 // pred_check
        %p239 = pneg %p238
      $region38: #{tpu_custom_call.1} parent=5 // pred_check_branch
        %241 = sbr.rel (%p239) target = $region40
      $region39: #{tpu_custom_call.1} parent=5 // pred_region
        // Predicated region
        $region41: #{tpu_custom_call.1} parent=39 // pred_check
          %p242 = pneg %p37
        $region42: #{tpu_custom_call.1} parent=39 // pred_check_branch
          %244 = sbr.rel (%p242) target = $region44
        $region43: #{tpu_custom_call.1} parent=39 // pred_region
          %s245 = smul.u32 4, %s17
          %p246 = scmp.lt.s32.totalorder %s245, 7
          %s247 = scalar_select %p246, %s245, 7
          %s248 = smul.addr %s247, 8
          %s249 = scalar_lea.vmem %s0, %s248
          %s250 = smul.u32 4, %s17
        $region44: #{tpu_custom_call.1} parent=39 // pred_fallthru
          _
      $region40: #{tpu_custom_call.1} parent=5 // pred_fallthru
        _
      %p251 = scmp.le.s32.totalorder 1, %s17
      %p252 = scmp.lt.s32.totalorder %s17, 3
      %p253 = pnand %p251, %p252
      %p254 = pneg %p253
      // Predicated region
      $region45: #{tpu_custom_call.1} parent=5 // pred_check
        _
      $region46: #{tpu_custom_call.1} parent=5 // pred_check_branch
        %256 = sbr.rel (%p253) target = $region48
      $region47: #{tpu_custom_call.1} parent=5 // pred_region
        %s257 = ssub.s32 %s17, 1
        // Predicated region
        $region49: #{tpu_custom_call.1} parent=47 // pred_check
          %p258 = pneg %p148
        $region50: #{tpu_custom_call.1} parent=47 // pred_check_branch
          %260 = sbr.rel (%p258) target = $region52
        $region51: #{tpu_custom_call.1} parent=47 // pred_region
          %261 = dma.done [#allocation3], 1024
        $region52: #{tpu_custom_call.1} parent=47 // pred_fallthru
          _
        %s262 = smul.u32 4, %s22
        %p263 = scmp.lt.s32.totalorder %s262, 7
        %s264 = scalar_select %p263, %s262, 7
        %s265 = smul.addr %s264, 8
        %s266 = scalar_lea.vmem %s0, %s265
        %p267 = pneg %p43
        %p268 = pneg %p40
        %p269 = pneg %p64
        %p270 = pneg %p61
        %p271 = pneg %p85
        %p272 = pneg %p82
        %p273 = pneg %p106
        %p274 = pneg %p103
        %p275 = pneg %p127
        %p276 = pneg %p124
        %p277 = pneg %p148
        %p278 = pneg %p145
        %p279 = pneg %p169
        %p280 = pneg %p166
        %p281 = pneg %p195
        %p282 = pneg %p192
        %s283 = sand.u32 %s182, 1
        %s284 = scalar_lea.sflag [#allocation4], %s283
        %s285 = sand.u32 %s182, 1
        %s286 = smul.addr %s285, 32
        %s287 = scalar_lea.vmem [#allocation5], %s286
        %s288 = smul.u32 4, %s22
        %p289 = scmp.lt.s32.totalorder %s288, 7
        %s290 = scalar_select %p289, %s288, 7
        %s291 = smul.addr %s290, 8
        %s292 = scalar_lea.vmem %s0, %s291
        %s293 = smul.u32 4, %s22
        %s294 = smul.u32 4, %s22
        %v296 = vld [vmem:[%s292] sm:$0xff]
        %v297 = vld [vmem:[%s292 + $0x8] sm:$0xff]
        %v298 = vld [vmem:[%s292 + $0x10] sm:$0xff]
        %v299 = vld [vmem:[%s292 + $0x18] sm:$0xff]
        %v300 = vld [vmem:[%s1] sm:$0xf]
        %v301 = vld [vmem:[%s1 + $0x4] sm:$0xf]
        %v302 = vld [vmem:[%s2] sm:$0x1]
        %v303 = vpack.c.bf16 %v297, %v296
        %v304 = vpack.c.bf16 %v299, %v298
        %v306 = vlaneseq
        %v307 = vshrl.u32 %v306, 7
        %v308 = vsub.s32 0, %v307
        %v309 = vrot.slane %v302, %v308
        %v313 = vunpack.c.l.b16 %v300
        %v314 = vunpack.c.l.b16 %v301
        %v315 = vpack.c.b16 %v314, %v313
        %vm317 = vcmask 130048
        %v319 = vsel %vm317, %v303, 0
        %v322 = vsel %vm317, %v304, 0
        %324 = vmatprep.subr.bf16.mxu0 0
        %325 = vmatpush1.bf16.msra.mxu0 %v315
        %326 = vmatprep.subr.bf16.mxu0 0
        %327 = vmatpush1.bf16.msra.mxu0 0
        %328 = vmatprep.subr.bf16.mxu0 0
        %329 = vmatpush1.bf16.msra.mxu0 0
        %330 = vmatprep.subr.bf16.mxu0 0
        %331 = vmatpush1.bf16.msra.mxu0 0
        %332 = vmatprep.subr.bf16.mxu0 0
        %333 = vmatpush1.bf16.msra.mxu0 0
        %334 = vmatprep.subr.bf16.mxu0 0
        %335 = vmatpush1.bf16.msra.mxu0 0
        %336 = vmatprep.subr.bf16.mxu0 0
        %337 = vmatpush1.bf16.msra.mxu0 0
        %338 = vmatprep.subr.bf16.mxu0 0
        %339 = vmatpush1.bf16.msra.mxu0 0
        %340 = vmatprep.subr.bf16.mxu0 0
        %341 = vmatpush1.bf16.msra.mxu0 0
        %342 = vmatprep.subr.bf16.mxu0 0
        %343 = vmatpush1.bf16.msra.mxu0 0
        %344 = vmatprep.subr.bf16.mxu0 0
        %345 = vmatpush1.bf16.msra.mxu0 0
        %346 = vmatprep.subr.bf16.mxu0 0
        %347 = vmatpush1.bf16.msra.mxu0 0
        %348 = vmatprep.subr.bf16.mxu0 0
        %349 = vmatpush1.bf16.msra.mxu0 0
        %350 = vmatprep.subr.bf16.mxu0 0
        %351 = vmatpush1.bf16.msra.mxu0 0
        %352 = vmatprep.subr.bf16.mxu0 0
        %353 = vmatpush1.bf16.msra.mxu0 0
        %354 = vmatprep.subr.bf16.mxu0 0
        %355 = vmatpush1.bf16.msra.mxu0 0
        %356 = vmatprep.mubr.bf16.mxu0 0
        %357 = vmatmul.mubr.bf16.gmra.mrb[0].mxu0 %v319
        %v358 = vpop.f32.mrb[0].mxu0
        %v359 = vadd.f32 %v309, %v358
        %v360 = vpop.f32.mrb[0].mxu0
        %v361 = vpop.f32.mrb[0].mxu0
        %v362 = vadd.f32 %v309, %v361
        %v363 = vpop.f32.mrb[0].mxu0
        %364 = vmatprep.mubr.bf16.mxu0 0
        %365 = vmatmul.mubr.bf16.gmra.mrb[0].mxu0 %v322
        %v366 = vpop.f32.mrb[0].mxu0
        %v367 = vadd.f32 %v309, %v366
        %v368 = vpop.f32.mrb[0].mxu0
        %v369 = vpop.f32.mrb[0].mxu0
        %v370 = vadd.f32 %v309, %v369
        %v371 = vpop.f32.mrb[0].mxu0
        %372 = vdwg.mxu0
        %v373 = vtanh.pop %v359
        %v374 = vtanh.pop %v362
        %v375 = vtanh.pop %v367
        %v376 = vtanh.pop %v370
        %v377 = vld [vmem:[%s3] sm:$0xf]
        %v378 = vld [vmem:[%s3 + $0x4] sm:$0xf]
        %v379 = vld [vmem:[%s3 + $0x8] sm:$0xf]
        %v380 = vld [vmem:[%s3 + $0xc] sm:$0xf]
        %v381 = vld [vmem:[%s3 + $0x10] sm:$0xf]
        %v382 = vld [vmem:[%s3 + $0x14] sm:$0xf]
        %v383 = vld [vmem:[%s3 + $0x18] sm:$0xf]
        %v384 = vld [vmem:[%s3 + $0x1c] sm:$0xf]
        %v385 = vld [vmem:[%s3 + $0x20] sm:$0xf]
        %v386 = vld [vmem:[%s3 + $0x24] sm:$0xf]
        %v387 = vld [vmem:[%s3 + $0x28] sm:$0xf]
        %v388 = vld [vmem:[%s3 + $0x2c] sm:$0xf]
        %v389 = vld [vmem:[%s3 + $0x30] sm:$0xf]
        %v390 = vld [vmem:[%s3 + $0x34] sm:$0xf]
        %v391 = vld [vmem:[%s3 + $0x38] sm:$0xf]
        %v392 = vld [vmem:[%s3 + $0x3c] sm:$0xf]
        %v393 = vld [vmem:[%s4] sm:$0x1]
        %v394 = vpack.c.bf16 %v374, %v373
        %v395 = vpack.c.bf16 %v376, %v375
        %v397 = vlaneseq
        %v398 = vshrl.u32 %v397, 7
        %v399 = vsub.s32 0, %v398
        %v400 = vrot.slane %v393, %v399
        %v418 = vunpack.c.l.b16 %v377
        %v419 = vunpack.c.l.b16 %v378
        %v420 = vunpack.c.l.b16 %v379
        %v421 = vunpack.c.l.b16 %v380
        %v422 = vunpack.c.l.b16 %v381
        %v423 = vunpack.c.l.b16 %v382
        %v424 = vunpack.c.l.b16 %v383
        %v425 = vunpack.c.l.b16 %v384
        %v426 = vunpack.c.l.b16 %v385
        %v427 = vunpack.c.l.b16 %v386
        %v428 = vunpack.c.l.b16 %v387
        %v429 = vunpack.c.l.b16 %v388
        %v430 = vunpack.c.l.b16 %v389
        %v431 = vunpack.c.l.b16 %v390
        %v432 = vunpack.c.l.b16 %v391
        %v433 = vunpack.c.l.b16 %v392
        %v434 = vpack.c.b16 %v419, %v418
        %v435 = vpack.c.b16 %v421, %v420
        %v436 = vpack.c.b16 %v423, %v422
        %v437 = vpack.c.b16 %v425, %v424
        %v438 = vpack.c.b16 %v427, %v426
        %v439 = vpack.c.b16 %v429, %v428
        %v440 = vpack.c.b16 %v431, %v430
        %v441 = vpack.c.b16 %v433, %v432
        %450 = vmatprep.subr.bf16.mxu0 0
        %451 = vmatpush1.bf16.msra.mxu0 %v434
        %452 = vmatprep.subr.bf16.mxu0 0
        %453 = vmatpush1.bf16.msra.mxu0 %v435
        %454 = vmatprep.subr.bf16.mxu0 0
        %455 = vmatpush1.bf16.msra.mxu0 %v436
        %456 = vmatprep.subr.bf16.mxu0 0
        %457 = vmatpush1.bf16.msra.mxu0 %v437
        %458 = vmatprep.subr.bf16.mxu0 0
        %459 = vmatpush1.bf16.msra.mxu0 %v438
        %460 = vmatprep.subr.bf16.mxu0 0
        %461 = vmatpush1.bf16.msra.mxu0 %v439
        %462 = vmatprep.subr.bf16.mxu0 0
        %463 = vmatpush1.bf16.msra.mxu0 %v440
        %464 = vmatprep.subr.bf16.mxu0 0
        %465 = vmatpush1.bf16.msra.mxu0 %v441
        %466 = vmatprep.subr.bf16.mxu0 0
        %467 = vmatpush1.bf16.msra.mxu0 0
        %468 = vmatprep.subr.bf16.mxu0 0
        %469 = vmatpush1.bf16.msra.mxu0 0
        %470 = vmatprep.subr.bf16.mxu0 0
        %471 = vmatpush1.bf16.msra.mxu0 0
        %472 = vmatprep.subr.bf16.mxu0 0
        %473 = vmatpush1.bf16.msra.mxu0 0
        %474 = vmatprep.subr.bf16.mxu0 0
        %475 = vmatpush1.bf16.msra.mxu0 0
        %476 = vmatprep.subr.bf16.mxu0 0
        %477 = vmatpush1.bf16.msra.mxu0 0
        %478 = vmatprep.subr.bf16.mxu0 0
        %479 = vmatpush1.bf16.msra.mxu0 0
        %480 = vmatprep.subr.bf16.mxu0 0
        %481 = vmatpush1.bf16.msra.mxu0 0
        %482 = vmatprep.mubr.bf16.mxu0 0
        %483 = vmatmul.mubr.bf16.gmra.mrb[0].mxu0 %v394
        %v484 = vpop.f32.mrb[0].mxu0
        %v485 = vadd.f32 %v400, %v484
        %v486 = vpop.f32.mrb[0].mxu0
        %v487 = vpop.f32.mrb[0].mxu0
        %v488 = vadd.f32 %v400, %v487
        %v489 = vpop.f32.mrb[0].mxu0
        %490 = vmatprep.mubr.bf16.mxu0 0
        %491 = vmatmul.mubr.bf16.gmra.mrb[0].mxu0 %v395
        %v492 = vpop.f32.mrb[0].mxu0
        %v493 = vadd.f32 %v400, %v492
        %v494 = vpop.f32.mrb[0].mxu0
        %v495 = vpop.f32.mrb[0].mxu0
        %v496 = vadd.f32 %v400, %v495
        %v497 = vpop.f32.mrb[0].mxu0
        %498 = vdwg.mxu0
        %v499 = vtanh.pop %v485
        %v500 = vtanh.pop %v488
        %v501 = vtanh.pop %v493
        %v502 = vtanh.pop %v496
        %v503 = vld [vmem:[#allocation2] sm:$0xf]
        %v504 = vld [vmem:[#allocation2 + $0x4] sm:$0xf]
        %v505 = vld [vmem:[#allocation2 + $0x8] sm:$0xf]
        %v506 = vld [vmem:[#allocation2 + $0xc] sm:$0xf]
        %v507 = vld [vmem:[#allocation2 + $0x10] sm:$0xf]
        %v508 = vld [vmem:[#allocation2 + $0x14] sm:$0xf]
        %v509 = vld [vmem:[#allocation2 + $0x18] sm:$0xf]
        %v510 = vld [vmem:[#allocation2 + $0x1c] sm:$0xf]
        %v511 = vld [vmem:[#allocation2 + $0x20] sm:$0xf]
        %v512 = vld [vmem:[#allocation2 + $0x24] sm:$0xf]
        %v513 = vld [vmem:[#allocation2 + $0x28] sm:$0xf]
        %v514 = vld [vmem:[#allocation2 + $0x2c] sm:$0xf]
        %v515 = vld [vmem:[#allocation2 + $0x30] sm:$0xf]
        %v516 = vld [vmem:[#allocation2 + $0x34] sm:$0xf]
        %v517 = vld [vmem:[#allocation2 + $0x38] sm:$0xf]
        %v518 = vld [vmem:[#allocation2 + $0x3c] sm:$0xf]
        %v519 = vld [vmem:[%s6] sm:$0x1]
        %v520 = vpack.c.bf16 %v500, %v499
        %v521 = vpack.c.bf16 %v502, %v501
        %v523 = vlaneseq
        %v524 = vshrl.u32 %v523, 7
        %v525 = vsub.s32 0, %v524
        %v526 = vrot.slane %v519, %v525
        %v544 = vunpack.c.l.b16 %v503
        %v545 = vunpack.c.l.b16 %v504
        %v546 = vunpack.c.l.b16 %v505
        %v547 = vunpack.c.l.b16 %v506
        %v548 = vunpack.c.l.b16 %v507
        %v549 = vunpack.c.l.b16 %v508
        %v550 = vunpack.c.l.b16 %v509
        %v551 = vunpack.c.l.b16 %v510
        %v552 = vunpack.c.l.b16 %v511
        %v553 = vunpack.c.l.b16 %v512
        %v554 = vunpack.c.l.b16 %v513
        %v555 = vunpack.c.l.b16 %v514
        %v556 = vunpack.c.l.b16 %v515
        %v557 = vunpack.c.l.b16 %v516
        %v558 = vunpack.c.l.b16 %v517
        %v559 = vunpack.c.l.b16 %v518
        %v560 = vpack.c.b16 %v545, %v544
        %v561 = vpack.c.b16 %v547, %v546
        %v562 = vpack.c.b16 %v549, %v548
        %v563 = vpack.c.b16 %v551, %v550
        %v564 = vpack.c.b16 %v553, %v552
        %v565 = vpack.c.b16 %v555, %v554
        %v566 = vpack.c.b16 %v557, %v556
        %v567 = vpack.c.b16 %v559, %v558
        %576 = vmatprep.subr.bf16.mxu0 0
        %577 = vmatpush1.bf16.msra.mxu0 %v560
        %578 = vmatprep.subr.bf16.mxu0 0
        %579 = vmatpush1.bf16.msra.mxu0 %v561
        %580 = vmatprep.subr.bf16.mxu0 0
        %581 = vmatpush1.bf16.msra.mxu0 %v562
        %582 = vmatprep.subr.bf16.mxu0 0
        %583 = vmatpush1.bf16.msra.mxu0 %v563
        %584 = vmatprep.subr.bf16.mxu0 0
        %585 = vmatpush1.bf16.msra.mxu0 %v564
        %586 = vmatprep.subr.bf16.mxu0 0
        %587 = vmatpush1.bf16.msra.mxu0 %v565
        %588 = vmatprep.subr.bf16.mxu0 0
        %589 = vmatpush1.bf16.msra.mxu0 %v566
        %590 = vmatprep.subr.bf16.mxu0 0
        %591 = vmatpush1.bf16.msra.mxu0 %v567
        %592 = vmatprep.subr.bf16.mxu0 0
        %593 = vmatpush1.bf16.msra.mxu0 0
        %594 = vmatprep.subr.bf16.mxu0 0
        %595 = vmatpush1.bf16.msra.mxu0 0
        %596 = vmatprep.subr.bf16.mxu0 0
        %597 = vmatpush1.bf16.msra.mxu0 0
        %598 = vmatprep.subr.bf16.mxu0 0
        %599 = vmatpush1.bf16.msra.mxu0 0
        %600 = vmatprep.subr.bf16.mxu0 0
        %601 = vmatpush1.bf16.msra.mxu0 0
        %602 = vmatprep.subr.bf16.mxu0 0
        %603 = vmatpush1.bf16.msra.mxu0 0
        %604 = vmatprep.subr.bf16.mxu0 0
        %605 = vmatpush1.bf16.msra.mxu0 0
        %606 = vmatprep.subr.bf16.mxu0 0
        %607 = vmatpush1.bf16.msra.mxu0 0
        %608 = vmatprep.mubr.bf16.mxu0 0
        %609 = vmatmul.mubr.bf16.gmra.mrb[0].mxu0 %v520
        %v610 = vpop.f32.mrb[0].mxu0
        %v611 = vadd.f32 %v526, %v610
        %v612 = vpop.f32.mrb[0].mxu0
        %v613 = vpop.f32.mrb[0].mxu0
        %v614 = vadd.f32 %v526, %v613
        %v615 = vpop.f32.mrb[0].mxu0
        %616 = vmatprep.mubr.bf16.mxu0 0
        %617 = vmatmul.mubr.bf16.gmra.mrb[0].mxu0 %v521
        %v618 = vpop.f32.mrb[0].mxu0
        %v619 = vadd.f32 %v526, %v618
        %v620 = vpop.f32.mrb[0].mxu0
        %v621 = vpop.f32.mrb[0].mxu0
        %v622 = vadd.f32 %v526, %v621
        %v623 = vpop.f32.mrb[0].mxu0
        %624 = vdwg.mxu0
        %625 = vst [vmem:[%s287] sm:$0xff] %v611
        %626 = vst [vmem:[%s287 + $0x8] sm:$0xff] %v614
        %627 = vst [vmem:[%s287 + $0x10] sm:$0xff] %v619
        %628 = vst [vmem:[%s287 + $0x18] sm:$0xff] %v622
        %s629 = sand.u32 %s182, 1
        %s630 = scalar_lea.sflag [#allocation4], %s629
        %s631 = sand.u32 %s182, 1
        %s632 = smul.addr %s631, 32
        %s633 = scalar_lea.vmem [#allocation5], %s632
        // Predicated region
        $region53: #{tpu_custom_call.1} parent=47 // pred_check
          %p634 = pneg %p192
        $region54: #{tpu_custom_call.1} parent=47 // pred_check_branch
          %636 = sbr.rel (%p634) target = $region56
        $region55: #{tpu_custom_call.1} parent=47 // pred_region
          %s637 = smul.u32 4, %s22
          %s639 = ssub.s32 512, 512
          %640 = vsyncadd %s630, %s639
          %s641 = smul.addr %s637, 128
          %s642 = scalar_lea.hbm %s7, %s641
          %s643 = sshll.u32 %s633, 4
          %s644 = int_to_ptr.vmem [resolvable:$true] %s643
          %649 = dma.vmem_to_hbm [thread:$0]  %s644, 512, %s642, %s630, 128, 128, 8
        $region56: #{tpu_custom_call.1} parent=47 // pred_fallthru
          _
      $region48: #{tpu_custom_call.1} parent=5 // pred_fallthru
        _
      %p650 = scmp.le.s32.totalorder 2, %s17
      // Predicated region
      $region57: #{tpu_custom_call.1} parent=5 // pred_check
        %p651 = pneg %p650
      $region58: #{tpu_custom_call.1} parent=5 // pred_check_branch
        %653 = sbr.rel (%p651) target = $region60
      $region59: #{tpu_custom_call.1} parent=5 // pred_region
        %s654 = ssub.s32 %s17, 2
        // Predicated region
        $region61: #{tpu_custom_call.1} parent=59 // pred_check
          %p655 = pneg %p198
        $region62: #{tpu_custom_call.1} parent=59 // pred_check_branch
          %657 = sbr.rel (%p655) target = $region64
        $region63: #{tpu_custom_call.1} parent=59 // pred_region
          %s658 = sand.u32 %s183, 1
          %s659 = scalar_lea.sflag [#allocation4], %s658
          %s660 = sand.u32 %s183, 1
          %s661 = smul.addr %s660, 32
          %s662 = scalar_lea.vmem [#allocation5], %s661
          %663 = dma.done %s659, 512
        $region64: #{tpu_custom_call.1} parent=59 // pred_fallthru
          _
      $region60: #{tpu_custom_call.1} parent=5 // pred_fallthru
        _
    $region6: #{tpu_custom_call.1} parent=1 // loop_footer
      %s21 = sadd.s32 1, %s17
    $region7: #{tpu_custom_call.1} parent=1 // loop_footer_branch
      %16 = sbr.rel target = $region3
    $region8: #{tpu_custom_call.1} parent=1 // loop_exit
      _
    %664 = vsyncpa [#allocation3], 1
    %s665 = scalar_lea.sflag [#allocation3], 1
    %666 = vsyncpa %s665, 1
    %667 = vsyncpa [#allocation4], 1
    %s668 = scalar_lea.sflag [#allocation4], 1
    %669 = vsyncpa %s668, 1

</llo_original>
